<compile_context>
chip_gen: v7x
topology: tpu7x:2x2x1
jax: 0.10.0
libtpu: 0.0.40
codegen_flags: <defaults>
</compile_context>

<pallas_src>
import jax
import jax.numpy as jnp
from jax.experimental import pallas as pl
from jax.experimental.pallas import tpu as pltpu


_TILE_N = 8   # node tile for the attention stage; multiple of 8 (sublane rule).  At real N
              # raise it so each x tile streams >=512 rows on the node*token axis.


def _softplus(x):
    # numerically-stable softplus, f32 (VPU/EUP)
    return jnp.maximum(x, 0.0) + jnp.log1p(jnp.exp(-jnp.abs(x)))


# ---------------------------------------------------------------- kernel 1: attention

def _attn_kernel(x_ref, watt_ref, wproj_ref, bproj_ref, h_ref):
    TN, S, B = x_ref.shape
    H = h_ref.shape[-1]

    xt = x_ref[...]                                               # [TN, S, B] bf16
    # projected token features on the MXU (bf16 operands, f32 accumulation)
    y = jnp.dot(xt.reshape(TN * S, B), wproj_ref[...],
                preferred_element_type=jnp.float32).reshape(TN, S, H)

    # token scores in f32 on the VPU/XLU (v5e: no bf16 VPU/EUP -> keep epilogue f32);
    # produced directly in [TN, S] layout, no lane-boundary slice of a packed matmul.
    sc = jnp.sum(xt.astype(jnp.float32) * watt_ref[...].reshape(1, 1, B), axis=-1)
    sc = sc - jnp.max(sc, axis=-1, keepdims=True)
    e = jnp.exp(sc)
    inv = pl.reciprocal(jnp.sum(e, axis=-1, keepdims=True), approx=True)
    alpha = e * inv                                               # [TN, S] f32

    # pool-then-project == project-then-pool (linearity); pool in H space, f32.
    h_ref[...] = jnp.sum(alpha[:, :, None] * y, axis=1) + bproj_ref[...]   # [TN, H]


# ---------------------------------------------------------------- kernel 2: GCN + box

def _gnn_box_kernel(h_ref, a_ref, w1_ref, b1_ref, w2_ref, b2_ref,
                    wmin_ref, bmin_ref, wdel_ref, bdel_ref, o_ref):
    H = h_ref.shape[-1]
    h = h_ref[...]                                                # [N, H] f32
    a = a_ref[...]                                                # [N, N] bf16

    # GCNConv 1 -> relu
    t1 = jnp.dot(h.astype(jnp.bfloat16), w1_ref[...],
                 preferred_element_type=jnp.float32)
    g1 = jnp.dot(a, t1.astype(jnp.bfloat16),
                 preferred_element_type=jnp.float32) + b1_ref[...]
    g1 = jnp.maximum(g1, 0.0)
    # TODO(synk): F.dropout(training=True) randomness omitted — identity (inference mode).

    # GCNConv 2 + residual
    t2 = jnp.dot(g1.astype(jnp.bfloat16), w2_ref[...],
                 preferred_element_type=jnp.float32)
    g2 = jnp.dot(a, t2.astype(jnp.bfloat16),
                 preferred_element_type=jnp.float32) + b2_ref[...]
    z = g2 + h                                                    # [N, H] f32

    # GeometricBox head: two H-wide matmuls, direct sub-ref stores (no slice+concat relayout).
    zb = z.astype(jnp.bfloat16)
    mn = jnp.dot(zb, wmin_ref[...], preferred_element_type=jnp.float32) + bmin_ref[...]
    dl = jnp.dot(zb, wdel_ref[...], preferred_element_type=jnp.float32) + bdel_ref[...]
    o_ref[:, :H] = mn                                             # box_min
    o_ref[:, H:] = mn + _softplus(dl)                             # box_max
    # NOTE: 2H=64 lanes -> masked stores; at large N pad the output to 128 lanes in the
    # wrapper for unmasked vst (irrelevant at demo size).


# ---------------------------------------------------------------- wrappers

_VMEM_FULL = pl.BlockSpec(memory_space=pltpu.MemorySpace.VMEM)


def build_norm_adj(edge_index, edge_weight, num_nodes):
    """Dense GCN-normalized adjacency: D^-1/2 (A + I) D^-1/2, A[dst, src] = w."""
    src, dst = edge_index[0], edge_index[1]
    a = jnp.zeros((num_nodes, num_nodes), jnp.float32).at[dst, src].add(edge_weight)
    a = a + jnp.eye(num_nodes, dtype=jnp.float32)        # self loops, weight 1
    deg = jnp.sum(a, axis=1)
    dinv = jnp.where(deg > 0, 1.0 / jnp.sqrt(deg), 0.0)
    return dinv[:, None] * a * dinv[None, :]


@jax.jit
def model_forward(x, a_hat, params):
    N, S, B = x.shape
    H = params["w_proj"].shape[1]
    tile_n = _TILE_N if (N % _TILE_N == 0) else N

    # bf16 matmul operands (f32 accumulation inside the kernels)
    x_bf = x.astype(jnp.bfloat16)
    a_bf = a_hat.astype(jnp.bfloat16)
    wproj = params["w_proj"].astype(jnp.bfloat16)                 # [B, H]
    watt = params["w_att"].astype(jnp.float32)                    # [1, B] (f32 scoring)
    w1, w2 = params["w_g1"].astype(jnp.bfloat16), params["w_g2"].astype(jnp.bfloat16)
    wmin, wdel = params["w_min"].astype(jnp.bfloat16), params["w_del"].astype(jnp.bfloat16)

    # ---------------- call 1: attention pooling + projection (node-tiled, parallel) -----
    blk1 = (tile_n * S * B * 2 + B * H * 2 + B * 4 + H * 4 + tile_n * H * 4)
    attn_cost = pl.CostEstimate(
        flops=2 * N * S * B * H + 2 * N * S * B + 2 * N * S * H,
        transcendentals=N * S + N,
        bytes_accessed=N * S * B * 2 + B * H * 2 + B * 4 + H * 4 + N * H * 4)

    h = pl.pallas_call(
        _attn_kernel,
        out_shape=jax.ShapeDtypeStruct((N, H), jnp.float32),
        grid=(N // tile_n,),
        in_specs=[
            pl.BlockSpec((tile_n, S, B), lambda i: (i, 0, 0)),    # x, blocked over nodes
            pl.BlockSpec((1, B), lambda i: (0, 0)),               # w_att
            pl.BlockSpec((B, H), lambda i: (0, 0)),               # w_proj
            pl.BlockSpec((1, H), lambda i: (0, 0)),               # b_proj
        ],
        out_specs=pl.BlockSpec((tile_n, H), lambda i: (i, 0)),
        compiler_params=pltpu.CompilerParams(
            dimension_semantics=("parallel",),
            vmem_limit_bytes=2 * blk1 + (8 << 20)),
        cost_estimate=attn_cost,
    )(x_bf, watt, wproj, params["b_proj"])

    # ---------------- call 2: GCN x2 + residual + GeometricBox (gridless, small) --------
    args2 = (h, a_bf, w1, params["b_g1"], w2, params["b_g2"],
             wmin, params["b_min"], wdel, params["b_del"])
    bytes2 = sum(a.size * a.dtype.itemsize for a in args2) + N * 2 * H * 4
    gnn_cost = pl.CostEstimate(
        flops=8 * N * H * H + 4 * N * N * H,
        transcendentals=2 * N * H,
        bytes_accessed=bytes2)

    return pl.pallas_call(
        _gnn_box_kernel,
        out_shape=jax.ShapeDtypeStruct((N, 2 * H), jnp.float32),
        in_specs=[_VMEM_FULL] * len(args2),
        out_specs=_VMEM_FULL,
        compiler_params=pltpu.CompilerParams(vmem_limit_bytes=2 * bytes2 + (8 << 20)),
        cost_estimate=gnn_cost,
    )(*args2)


# ---------------------------------------------------------------- reference (pure JAX, f32)

def reference_forward(x, a_hat, params):
    wa = params["w_att"][0]
    scores = jnp.einsum("nsb,b->ns", x, wa)
    alpha = jax.nn.softmax(scores, axis=-1)
    pooled = jnp.einsum("ns,nsb->nb", alpha, x)
    h = pooled @ params["w_proj"] + params["b_proj"]
    g1 = jnp.maximum(a_hat @ (h @ params["w_g1"]) + params["b_g1"], 0.0)
    g2 = a_hat @ (g1 @ params["w_g2"]) + params["b_g2"]
    z = g2 + h
    mn = z @ params["w_min"] + params["b_min"]
    mx = mn + jax.nn.softplus(z @ params["w_del"] + params["b_del"])
    return jnp.concatenate([mn, mx], axis=-1)


# ---------------------------------------------------------------- main

if __name__ == "__main__":
    N, S, B, H = 16, 8, 128, 32    # nodes, tokens, bert_dim (small), hidden_dim

    key = jax.random.PRNGKey(0)
    keys = jax.random.split(key, 12)

    # ring graph (both directions), deterministic edge weights
    src = jnp.concatenate([jnp.arange(N), (jnp.arange(N) + 1) % N])
    dst = jnp.concatenate([(jnp.arange(N) + 1) % N, jnp.arange(N)])
    edge_index = jnp.stack([src, dst])                                     # [2, 2N]
    edge_weight = 0.5 + jax.random.uniform(keys[0], (2 * N,), jnp.float32)

    x = jax.random.normal(keys[1], (N, S, B), jnp.float32)

    sc = 0.05
    params = {
        # Attention(bert_dim, hidden_dim)
        "w_att":  sc * jax.random.normal(keys[2], (1, B), jnp.float32),
        "w_proj": sc * jax.random.normal(keys[3], (B, H), jnp.float32),
        "b_proj": sc * jax.random.normal(keys[4], (1, H), jnp.float32),
        # GCNConv x 2 (weights stored [in, out])
        "w_g1":   sc * jax.random.normal(keys[5], (H, H), jnp.float32),
        "b_g1":   sc * jax.random.normal(keys[6], (1, H), jnp.float32),
        "w_g2":   sc * jax.random.normal(keys[7], (H, H), jnp.float32),
        "b_g2":   sc * jax.random.normal(keys[8], (1, H), jnp.float32),
        # GeometricBox(hidden_dim)
        "w_min":  sc * jax.random.normal(keys[9], (H, H), jnp.float32),
        "b_min":  sc * jax.random.normal(keys[10], (1, H), jnp.float32),
        "w_del":  sc * jax.random.normal(keys[11], (H, H), jnp.float32),
        "b_del":  jnp.zeros((1, H), jnp.float32),
    }

    a_hat = build_norm_adj(edge_index, edge_weight, N)

    out = model_forward(x, a_hat, params)
    out = jax.block_until_ready(out)

    ref = reference_forward(x, a_hat, params)
    assert out.shape == (N, 2 * H), out.shape
    # bf16 matmul operands vs. f32 reference -> bf16-appropriate tolerance
    assert jnp.allclose(out, ref, rtol=2e-2, atol=2e-2), "mismatch vs JAX reference"

    print("KERNEL_OK")
</pallas_src>

<mosaic_0001>
module attributes {stable_mosaic.version = 11 : i64} {
  func.func @_attn_kernel(%arg0: i32, %arg1: memref<8x8x128xbf16, #tpu.memory_space<vmem>>, %arg2: memref<1x128xf32, #tpu.memory_space<vmem>>, %arg3: memref<128x32xbf16, #tpu.memory_space<vmem>>, %arg4: memref<1x32xf32, #tpu.memory_space<vmem>>, %arg5: memref<8x32xf32, #tpu.memory_space<vmem>>) attributes {dimension_semantics = [#tpu.dimension_semantics<parallel>], iteration_bounds = array<i64: 2>, scalar_prefetch = 0 : i64, scratch_operands = 0 : i64, tpu.core_type = #tpu.core_type<tc>, window_params = [{transform_indices = @transform_0, window_bounds = array<i64: 8, 8, 128>}, {pipeline_mode = #tpu.pipeline_mode<synchronous>, transform_indices = @transform_1, window_bounds = array<i64: 1, 128>}, {pipeline_mode = #tpu.pipeline_mode<synchronous>, transform_indices = @transform_2, window_bounds = array<i64: 128, 32>}, {pipeline_mode = #tpu.pipeline_mode<synchronous>, transform_indices = @transform_3, window_bounds = array<i64: 1, 32>}, {transform_indices = @transform_4, window_bounds = array<i64: 8, 32>}]} {
    %c0 = arith.constant 0 : index
    %c0_0 = arith.constant 0 : index
    %c0_1 = arith.constant 0 : index
    %0 = vector.load %arg1[%c0, %c0_0, %c0_1] : memref<8x8x128xbf16, #tpu.memory_space<vmem>>, vector<8x8x128xbf16>
    %1 = vector.shape_cast %0 : vector<8x8x128xbf16> to vector<64x128xbf16>
    %c0_2 = arith.constant 0 : index
    %c0_3 = arith.constant 0 : index
    %2 = vector.load %arg3[%c0_2, %c0_3] : memref<128x32xbf16, #tpu.memory_space<vmem>>, vector<128x32xbf16>
    %cst = arith.constant dense<0.000000e+00> : vector<64x32xf32>
    %3 = tpu.matmul %1, %2, %cst {dimension_numbers = #tpu.dot_dimension_numbers<[1], [0], [0], [1], [0, 0, 1, 1], [], []>} : vector<64x128xbf16>, vector<128x32xbf16>, vector<64x32xf32> -> vector<64x32xf32>
    %4 = vector.shape_cast %3 : vector<64x32xf32> to vector<8x8x32xf32>
    %5 = arith.extf %0 : vector<8x8x128xbf16> to vector<8x8x128xf32>
    %c0_4 = arith.constant 0 : index
    %c0_5 = arith.constant 0 : index
    %6 = vector.load %arg2[%c0_4, %c0_5] : memref<1x128xf32, #tpu.memory_space<vmem>>, vector<1x128xf32>
    %7 = vector.shape_cast %6 : vector<1x128xf32> to vector<1x1x128xf32>
    %8 = vector.broadcast %7 : vector<1x1x128xf32> to vector<8x8x128xf32>
    %9 = arith.mulf %5, %8 : vector<8x8x128xf32>
    %cst_6 = arith.constant dense<0.000000e+00> : vector<8x8xf32>
    %10 = vector.multi_reduction <add>, %9, %cst_6 [2] : vector<8x8x128xf32> to vector<8x8xf32>
    %cst_7 = arith.constant dense<0xFF800000> : vector<8xf32>
    %11 = vector.multi_reduction <maximumf>, %10, %cst_7 [1] : vector<8x8xf32> to vector<8xf32>
    %12 = vector.shape_cast %11 : vector<8xf32> to vector<8x1xf32>
    %13 = vector.broadcast %12 : vector<8x1xf32> to vector<8x8xf32>
    %14 = arith.subf %10, %13 : vector<8x8xf32>
    %15 = math.exp %14 : vector<8x8xf32>
    %cst_8 = arith.constant dense<0.000000e+00> : vector<8xf32>
    %16 = vector.multi_reduction <add>, %15, %cst_8 [1] : vector<8x8xf32> to vector<8xf32>
    %17 = vector.shape_cast %16 : vector<8xf32> to vector<8x1xf32>
    %18 = tpu.reciprocal %17 {approx = true} : vector<8x1xf32> -> vector<8x1xf32>
    %19 = vector.broadcast %18 : vector<8x1xf32> to vector<8x8xf32>
    %20 = arith.mulf %15, %19 : vector<8x8xf32>
    %21 = vector.shape_cast %20 : vector<8x8xf32> to vector<8x8x1xf32>
    %22 = vector.broadcast %21 : vector<8x8x1xf32> to vector<8x8x32xf32>
    %23 = arith.mulf %22, %4 : vector<8x8x32xf32>
    %cst_9 = arith.constant dense<0.000000e+00> : vector<8x32xf32>
    %24 = vector.multi_reduction <add>, %23, %cst_9 [1] : vector<8x8x32xf32> to vector<8x32xf32>
    %c0_10 = arith.constant 0 : index
    %c0_11 = arith.constant 0 : index
    %25 = vector.load %arg4[%c0_10, %c0_11] : memref<1x32xf32, #tpu.memory_space<vmem>>, vector<1x32xf32>
    %26 = vector.broadcast %25 : vector<1x32xf32> to vector<8x32xf32>
    %27 = arith.addf %24, %26 : vector<8x32xf32>
    %c0_12 = arith.constant 0 : index
    %c0_13 = arith.constant 0 : index
    %28 = vector.load %arg5[%c0_12, %c0_13] : memref<8x32xf32, #tpu.memory_space<vmem>>, vector<8x32xf32>
    tpu.vector_store %arg5[%c0_12, %c0_13], %27 {strides = array<i32>} : memref<8x32xf32, #tpu.memory_space<vmem>>, vector<8x32xf32>,
    return
  }
  func.func @transform_0(%arg0: i32) -> (i32, i32, i32) {
    %c0_i32 = arith.constant 0 : i32
    %c0_i32_0 = arith.constant 0 : i32
    %c0_i32_1 = arith.constant 0 : i32
    return %arg0, %c0_i32, %c0_i32_0 : i32, i32, i32
  }
  func.func @transform_1(%arg0: i32) -> (i32, i32) {
    %c0_i32 = arith.constant 0 : i32
    %c0_i32_0 = arith.constant 0 : i32
    %c0_i32_1 = arith.constant 0 : i32
    return %c0_i32, %c0_i32_0 : i32, i32
  }
  func.func @transform_2(%arg0: i32) -> (i32, i32) {
    %c0_i32 = arith.constant 0 : i32
    %c0_i32_0 = arith.constant 0 : i32
    %c0_i32_1 = arith.constant 0 : i32
    return %c0_i32, %c0_i32_0 : i32, i32
  }
  func.func @transform_3(%arg0: i32) -> (i32, i32) {
    %c0_i32 = arith.constant 0 : i32
    %c0_i32_0 = arith.constant 0 : i32
    %c0_i32_1 = arith.constant 0 : i32
    return %c0_i32, %c0_i32_0 : i32, i32
  }
  func.func @transform_4(%arg0: i32) -> (i32, i32) {
    %c0_i32 = arith.constant 0 : i32
    %c0_i32_0 = arith.constant 0 : i32
    return %arg0, %c0_i32 : i32, i32
  }
}

module attributes {stable_mosaic.version = 11 : i64} {
  func.func @_gnn_box_kernel(%arg0: memref<16x32xf32, #tpu.memory_space<vmem>>, %arg1: memref<16x16xbf16, #tpu.memory_space<vmem>>, %arg2: memref<32x32xbf16, #tpu.memory_space<vmem>>, %arg3: memref<1x32xf32, #tpu.memory_space<vmem>>, %arg4: memref<32x32xbf16, #tpu.memory_space<vmem>>, %arg5: memref<1x32xf32, #tpu.memory_space<vmem>>, %arg6: memref<32x32xbf16, #tpu.memory_space<vmem>>, %arg7: memref<1x32xf32, #tpu.memory_space<vmem>>, %arg8: memref<32x32xbf16, #tpu.memory_space<vmem>>, %arg9: memref<1x32xf32, #tpu.memory_space<vmem>>, %arg10: memref<16x64xf32, #tpu.memory_space<vmem>>) attributes {dimension_semantics = [], scalar_prefetch = 0 : i64, scratch_operands = 0 : i64, tpu.core_type = #tpu.core_type<tc>} {
    %c0 = arith.constant 0 : index
    %c0_0 = arith.constant 0 : index
    %0 = vector.load %arg0[%c0, %c0_0] : memref<16x32xf32, #tpu.memory_space<vmem>>, vector<16x32xf32>
    %c0_1 = arith.constant 0 : index
    %c0_2 = arith.constant 0 : index
    %1 = vector.load %arg1[%c0_1, %c0_2] : memref<16x16xbf16, #tpu.memory_space<vmem>>, vector<16x16xbf16>
    %2 = arith.truncf %0 : vector<16x32xf32> to vector<16x32xbf16>
    %c0_3 = arith.constant 0 : index
    %c0_4 = arith.constant 0 : index
    %3 = vector.load %arg2[%c0_3, %c0_4] : memref<32x32xbf16, #tpu.memory_space<vmem>>, vector<32x32xbf16>
    %cst = arith.constant dense<0.000000e+00> : vector<16x32xf32>
    %4 = tpu.matmul %2, %3, %cst {dimension_numbers = #tpu.dot_dimension_numbers<[1], [0], [0], [1], [0, 0, 1, 1], [], []>} : vector<16x32xbf16>, vector<32x32xbf16>, vector<16x32xf32> -> vector<16x32xf32>
    %5 = arith.truncf %4 : vector<16x32xf32> to vector<16x32xbf16>
    %cst_5 = arith.constant dense<0.000000e+00> : vector<16x32xf32>
    %6 = tpu.matmul %1, %5, %cst_5 {dimension_numbers = #tpu.dot_dimension_numbers<[1], [0], [0], [1], [0, 0, 1, 1], [], []>} : vector<16x16xbf16>, vector<16x32xbf16>, vector<16x32xf32> -> vector<16x32xf32>
    %c0_6 = arith.constant 0 : index
    %c0_7 = arith.constant 0 : index
    %7 = vector.load %arg3[%c0_6, %c0_7] : memref<1x32xf32, #tpu.memory_space<vmem>>, vector<1x32xf32>
    %8 = vector.broadcast %7 : vector<1x32xf32> to vector<16x32xf32>
    %9 = arith.addf %6, %8 : vector<16x32xf32>
    %cst_8 = arith.constant 0.000000e+00 : f32
    %10 = vector.broadcast %cst_8 : f32 to vector<16x32xf32>
    %11 = arith.maximumf %9, %10 : vector<16x32xf32>
    %12 = arith.truncf %11 : vector<16x32xf32> to vector<16x32xbf16>
    %c0_9 = arith.constant 0 : index
    %c0_10 = arith.constant 0 : index
    %13 = vector.load %arg4[%c0_9, %c0_10] : memref<32x32xbf16, #tpu.memory_space<vmem>>, vector<32x32xbf16>
    %cst_11 = arith.constant dense<0.000000e+00> : vector<16x32xf32>
    %14 = tpu.matmul %12, %13, %cst_11 {dimension_numbers = #tpu.dot_dimension_numbers<[1], [0], [0], [1], [0, 0, 1, 1], [], []>} : vector<16x32xbf16>, vector<32x32xbf16>, vector<16x32xf32> -> vector<16x32xf32>
    %15 = arith.truncf %14 : vector<16x32xf32> to vector<16x32xbf16>
    %cst_12 = arith.constant dense<0.000000e+00> : vector<16x32xf32>
    %16 = tpu.matmul %1, %15, %cst_12 {dimension_numbers = #tpu.dot_dimension_numbers<[1], [0], [0], [1], [0, 0, 1, 1], [], []>} : vector<16x16xbf16>, vector<16x32xbf16>, vector<16x32xf32> -> vector<16x32xf32>
    %c0_13 = arith.constant 0 : index
    %c0_14 = arith.constant 0 : index
    %17 = vector.load %arg5[%c0_13, %c0_14] : memref<1x32xf32, #tpu.memory_space<vmem>>, vector<1x32xf32>
    %18 = vector.broadcast %17 : vector<1x32xf32> to vector<16x32xf32>
    %19 = arith.addf %16, %18 : vector<16x32xf32>
    %20 = arith.addf %19, %0 : vector<16x32xf32>
    %21 = arith.truncf %20 : vector<16x32xf32> to vector<16x32xbf16>
    %c0_15 = arith.constant 0 : index
    %c0_16 = arith.constant 0 : index
    %22 = vector.load %arg6[%c0_15, %c0_16] : memref<32x32xbf16, #tpu.memory_space<vmem>>, vector<32x32xbf16>
    %cst_17 = arith.constant dense<0.000000e+00> : vector<16x32xf32>
    %23 = tpu.matmul %21, %22, %cst_17 {dimension_numbers = #tpu.dot_dimension_numbers<[1], [0], [0], [1], [0, 0, 1, 1], [], []>} : vector<16x32xbf16>, vector<32x32xbf16>, vector<16x32xf32> -> vector<16x32xf32>
    %c0_18 = arith.constant 0 : index
    %c0_19 = arith.constant 0 : index
    %24 = vector.load %arg7[%c0_18, %c0_19] : memref<1x32xf32, #tpu.memory_space<vmem>>, vector<1x32xf32>
    %25 = vector.broadcast %24 : vector<1x32xf32> to vector<16x32xf32>
    %26 = arith.addf %23, %25 : vector<16x32xf32>
    %c0_20 = arith.constant 0 : index
    %c0_21 = arith.constant 0 : index
    %27 = vector.load %arg8[%c0_20, %c0_21] : memref<32x32xbf16, #tpu.memory_space<vmem>>, vector<32x32xbf16>
    %cst_22 = arith.constant dense<0.000000e+00> : vector<16x32xf32>
    %28 = tpu.matmul %21, %27, %cst_22 {dimension_numbers = #tpu.dot_dimension_numbers<[1], [0], [0], [1], [0, 0, 1, 1], [], []>} : vector<16x32xbf16>, vector<32x32xbf16>, vector<16x32xf32> -> vector<16x32xf32>
    %c0_23 = arith.constant 0 : index
    %c0_24 = arith.constant 0 : index
    %29 = vector.load %arg9[%c0_23, %c0_24] : memref<1x32xf32, #tpu.memory_space<vmem>>, vector<1x32xf32>
    %30 = vector.broadcast %29 : vector<1x32xf32> to vector<16x32xf32>
    %31 = arith.addf %28, %30 : vector<16x32xf32>
    %c0_25 = arith.constant 0 : index
    %c0_26 = arith.constant 0 : index
    %32 = vector.load %arg10[%c0_25, %c0_26] : memref<16x64xf32, #tpu.memory_space<vmem>>, vector<16x32xf32>
    tpu.vector_store %arg10[%c0_25, %c0_26], %26 {strides = array<i32>} : memref<16x64xf32, #tpu.memory_space<vmem>>, vector<16x32xf32>,
    %cst_27 = arith.constant 0.000000e+00 : f32
    %33 = vector.broadcast %cst_27 : f32 to vector<16x32xf32>
    %34 = arith.maximumf %31, %33 : vector<16x32xf32>
    %35 = math.absf %31 : vector<16x32xf32>
    %cst_28 = arith.constant 0.000000e+00 : f32
    %36 = vector.broadcast %cst_28 : f32 to vector<16x32xf32>
    %37 = arith.subf %36, %35 : vector<16x32xf32>
    %38 = math.exp %37 : vector<16x32xf32>
    %39 = math.log1p %38 : vector<16x32xf32>
    %40 = arith.addf %34, %39 : vector<16x32xf32>
    %41 = arith.addf %26, %40 : vector<16x32xf32>
    %c0_29 = arith.constant 0 : index
    %c32 = arith.constant 32 : index
    %42 = vector.load %arg10[%c0_29, %c32] : memref<16x64xf32, #tpu.memory_space<vmem>>, vector<16x32xf32>
    tpu.vector_store %arg10[%c0_29, %c32], %41 {strides = array<i32>} : memref<16x64xf32, #tpu.memory_space<vmem>>, vector<16x32xf32>,
    return
  }
}

</mosaic_0001>

<llo_original>
// kernel: model_forward.2
$region0: #{model_forward.2}
  #allocation0 [shape = 'u32[]', space=smem, size = 0x4, offset = 0x4, fixed_abs, tag = 'smem constant byte address 0x4 - core index']
  #allocation1 [shape = 'u32[144,128]{1,0:T(1,128)}', space=vmem, size = 0x12000, scoped, tag = 'internal scratch']
  %s0 = inlined_call_operand.vmem [shape: bf16[16,8,128], index: 0, kind: input, shape index: {}]
  %s1 = inlined_call_operand.vmem [shape: f32[1,128], index: 1, kind: input, shape index: {}]
  %s2 = inlined_call_operand.vmem [shape: bf16[128,32], index: 2, kind: input, shape index: {}]
  %s3 = inlined_call_operand.vmem [shape: f32[1,32], index: 3, kind: input, shape index: {}]
  %s4 = inlined_call_operand.vmem [shape: f32[16,32], index: 4, kind: output, shape index: {}]
  %s5 = sld [smem:[#allocation0]]
  $region49: #{model_forward.2} parent=0
    _
  %s7 = ssub.s32 1, %s5
  %s8 = scalar_select 0, %s7, %s5
  loop: start=0, step=1, limit=4
  $region2: #{model_forward.2} parent=0 // loop_pre_header
    _
  $region3: #{model_forward.2} parent=0 // loop_header
    %s10 = sphi 0, %s14
    %p11 = scmp.ge.s32.totalorder %s10, 4
    %s20 = sphi 0, %s22
    %s23 = sphi 0, %s20
    %s24 = sphi 0, %s23
    %s40 = sphi 0, %s24
    %s44 = sphi 0, %s44
    %s46 = sphi 0, %s44
    %s47 = sphi 0, %s46
    %s61 = sphi 0, %s47
    %s65 = sphi 0, %s65
    %s67 = sphi 0, %s65
    %s68 = sphi 0, %s67
    %s82 = sphi 0, %s68
    %s86 = sphi 0, %s86
    %s88 = sphi 0, %s86
    %s89 = sphi 0, %s88
    %s103 = sphi 0, %s89
    %s109 = sphi 0, %s111
    %s112 = sphi 0, %s109
    %s113 = sphi 0, %s112
    %s129 = sphi 0, %s113
  $region4: #{model_forward.2} parent=0 // loop_header_branch
    %13 = sbr.rel (%p11) target = $region8
  $region5: #{model_forward.2} parent=0 // loop_body
    %s15 = ssub.s32 %s10, 1
    %s16 = ssub.s32 %s10, 2
    %s17 = sadd.s32 %s10, 1
    %s18 = ssub.s32 %s10, %s17
    %p19 = scmp.eq.s32.totalorder %s18, 0
    %s21 = sadd.s32 %s20, 1
    %s22 = scalar_select %p19, %s20, %s21
    %p25 = pneg %p19
    %p26 = scmp.eq.s32.totalorder %s10, 1
    %p27 = por %p25, %p26
    %p28 = scmp.ne.s32.totalorder %s20, %s23
    %p29 = scmp.eq.s32.totalorder %s10, 0
    %p30 = por %p28, %p29
    %p31 = scmp.ne.s32.totalorder %s20, %s23
    %p32 = scmp.eq.s32.totalorder %s15, 1
    %p33 = por %p31, %p32
    %p34 = scmp.ne.s32.totalorder %s23, %s24
    %p35 = scmp.eq.s32.totalorder %s15, 0
    %p36 = por %p34, %p35
    %p37 = scmp.ne.s32.totalorder %s23, %s24
    %p38 = scmp.eq.s32.totalorder %s16, 1
    %p39 = por %p37, %p38
    %p41 = scmp.ne.s32.totalorder %s24, %s40
    %p42 = scmp.eq.s32.totalorder %s16, 0
    %p43 = por %p41, %p42
    %s45 = sadd.s32 %s44, 1
    %p48 = scmp.eq.s32.totalorder %s10, 1
    %p49 = scmp.ne.s32.totalorder %s44, %s46
    %p50 = scmp.eq.s32.totalorder %s10, 0
    %p51 = por %p49, %p50
    %p52 = scmp.ne.s32.totalorder %s44, %s46
    %p53 = scmp.eq.s32.totalorder %s15, 1
    %p54 = por %p52, %p53
    %p55 = scmp.ne.s32.totalorder %s46, %s47
    %p56 = scmp.eq.s32.totalorder %s15, 0
    %p57 = por %p55, %p56
    %p58 = scmp.ne.s32.totalorder %s46, %s47
    %p59 = scmp.eq.s32.totalorder %s16, 1
    %p60 = por %p58, %p59
    %p62 = scmp.ne.s32.totalorder %s47, %s61
    %p63 = scmp.eq.s32.totalorder %s16, 0
    %p64 = por %p62, %p63
    %s66 = sadd.s32 %s65, 1
    %p69 = scmp.eq.s32.totalorder %s10, 1
    %p70 = scmp.ne.s32.totalorder %s65, %s67
    %p71 = scmp.eq.s32.totalorder %s10, 0
    %p72 = por %p70, %p71
    %p73 = scmp.ne.s32.totalorder %s65, %s67
    %p74 = scmp.eq.s32.totalorder %s15, 1
    %p75 = por %p73, %p74
    %p76 = scmp.ne.s32.totalorder %s67, %s68
    %p77 = scmp.eq.s32.totalorder %s15, 0
    %p78 = por %p76, %p77
    %p79 = scmp.ne.s32.totalorder %s67, %s68
    %p80 = scmp.eq.s32.totalorder %s16, 1
    %p81 = por %p79, %p80
    %p83 = scmp.ne.s32.totalorder %s68, %s82
    %p84 = scmp.eq.s32.totalorder %s16, 0
    %p85 = por %p83, %p84
    %s87 = sadd.s32 %s86, 1
    %p90 = scmp.eq.s32.totalorder %s10, 1
    %p91 = scmp.ne.s32.totalorder %s86, %s88
    %p92 = scmp.eq.s32.totalorder %s10, 0
    %p93 = por %p91, %p92
    %p94 = scmp.ne.s32.totalorder %s86, %s88
    %p95 = scmp.eq.s32.totalorder %s15, 1
    %p96 = por %p94, %p95
    %p97 = scmp.ne.s32.totalorder %s88, %s89
    %p98 = scmp.eq.s32.totalorder %s15, 0
    %p99 = por %p97, %p98
    %p100 = scmp.ne.s32.totalorder %s88, %s89
    %p101 = scmp.eq.s32.totalorder %s16, 1
    %p102 = por %p100, %p101
    %p104 = scmp.ne.s32.totalorder %s89, %s103
    %p105 = scmp.eq.s32.totalorder %s16, 0
    %p106 = por %p104, %p105
    %s107 = ssub.s32 %s10, %s17
    %p108 = scmp.eq.s32.totalorder %s107, 0
    %s110 = sadd.s32 %s109, 1
    %s111 = scalar_select %p108, %s109, %s110
    %p114 = pneg %p108
    %p115 = scmp.eq.s32.totalorder %s10, 1
    %p116 = por %p114, %p115
    %p117 = scmp.ne.s32.totalorder %s109, %s112
    %p118 = scmp.eq.s32.totalorder %s10, 0
    %p119 = por %p117, %p118
    %p120 = scmp.ne.s32.totalorder %s109, %s112
    %p121 = scmp.eq.s32.totalorder %s15, 1
    %p122 = por %p120, %p121
    %p123 = scmp.ne.s32.totalorder %s112, %s113
    %p124 = scmp.eq.s32.totalorder %s15, 0
    %p125 = por %p123, %p124
    %p126 = scmp.ne.s32.totalorder %s112, %s113
    %p127 = scmp.eq.s32.totalorder %s16, 1
    %p128 = por %p126, %p127
    %p130 = scmp.ne.s32.totalorder %s113, %s129
    %p131 = scmp.eq.s32.totalorder %s16, 0
    %p132 = por %p130, %p131
    %p133 = scmp.le.s32.totalorder 1, %s10
    %p134 = scmp.lt.s32.totalorder %s10, 3
    %p135 = pnand %p133, %p134
    %p136 = pneg %p135
    // Predicated region
    $region9: #{model_forward.2} parent=5 // pred_check
      _
    $region10: #{model_forward.2} parent=5 // pred_check_branch
      %138 = sbr.rel (%p135) target = $region12
    $region11: #{model_forward.2} parent=5 // pred_region
      %s139 = ssub.s32 %s10, 1
      // Predicated region
      $region13: #{model_forward.2} parent=11 // pred_check
        %p140 = pneg %p57
      $region14: #{model_forward.2} parent=11 // pred_check_branch
        %142 = sbr.rel (%p140) target = $region16
      $region15: #{model_forward.2} parent=11 // pred_region
        _
      $region16: #{model_forward.2} parent=11 // pred_fallthru
        _
      // Predicated region
      $region17: #{model_forward.2} parent=11 // pred_check
        %p143 = pneg %p78
      $region18: #{model_forward.2} parent=11 // pred_check_branch
        %145 = sbr.rel (%p143) target = $region20
      $region19: #{model_forward.2} parent=11 // pred_region
        _
      $region20: #{model_forward.2} parent=11 // pred_fallthru
        _
      // Predicated region
      $region21: #{model_forward.2} parent=11 // pred_check
        %p146 = pneg %p99
      $region22: #{model_forward.2} parent=11 // pred_check_branch
        %148 = sbr.rel (%p146) target = $region24
      $region23: #{model_forward.2} parent=11 // pred_region
        _
      $region24: #{model_forward.2} parent=11 // pred_fallthru
        _
    $region12: #{model_forward.2} parent=5 // pred_fallthru
      _
    %p149 = scmp.lt.s32.totalorder %s10, 2
    // Predicated region
    $region25: #{model_forward.2} parent=5 // pred_check
      %p150 = pneg %p149
    $region26: #{model_forward.2} parent=5 // pred_check_branch
      %152 = sbr.rel (%p150) target = $region28
    $region27: #{model_forward.2} parent=5 // pred_region
      // Predicated region
      $region29: #{model_forward.2} parent=27 // pred_check
        %p153 = pneg %p30
      $region30: #{model_forward.2} parent=27 // pred_check_branch
        %155 = sbr.rel (%p153) target = $region32
      $region31: #{model_forward.2} parent=27 // pred_region
        %s156 = smul.u32 8, %s10
        %p157 = scmp.lt.s32.totalorder %s156, 15
        %s158 = scalar_select %p157, %s156, 15
        %s159 = smul.addr %s158, 4
        %s160 = scalar_lea.vmem %s0, %s159
        %s161 = smul.u32 8, %s10
      $region32: #{model_forward.2} parent=27 // pred_fallthru
        _
    $region28: #{model_forward.2} parent=5 // pred_fallthru
      _
    %p162 = scmp.le.s32.totalorder 1, %s10
    %p163 = scmp.lt.s32.totalorder %s10, 3
    %p164 = pnand %p162, %p163
    %p165 = pneg %p164
    // Predicated region
    $region33: #{model_forward.2} parent=5 // pred_check
      _
    $region34: #{model_forward.2} parent=5 // pred_check_branch
      %167 = sbr.rel (%p164) target = $region36
    $region35: #{model_forward.2} parent=5 // pred_region
      %s168 = ssub.s32 %s10, 1
      %s169 = smul.u32 8, %s15
      %p170 = scmp.lt.s32.totalorder %s169, 15
      %s171 = scalar_select %p170, %s169, 15
      %s172 = smul.addr %s171, 4
      %s173 = scalar_lea.vmem %s0, %s172
      %p174 = pneg %p36
      %p175 = pneg %p33
      %p176 = pneg %p57
      %p177 = pneg %p54
      %p178 = pneg %p78
      %p179 = pneg %p75
      %p180 = pneg %p99
      %p181 = pneg %p96
      %p182 = pneg %p125
      %p183 = pneg %p122
      %p184 = scmp.lt.s32.totalorder %s15, 1
      %s185 = scalar_select %p184, %s15, 1
      %s186 = smul.addr %s185, 8
      %s187 = scalar_lea.vmem %s4, %s186
      %s188 = smul.u32 8, %s15
      %p189 = scmp.lt.s32.totalorder %s188, 15
      %s190 = scalar_select %p189, %s188, 15
      %s191 = smul.addr %s190, 4
      %s192 = scalar_lea.vmem %s0, %s191
      %s193 = smul.u32 8, %s15
      %p194 = scmp.lt.s32.totalorder %s15, 1
      %s195 = scalar_select %p194, %s15, 1
      %s196 = smul.addr %s195, 8
      %s197 = scalar_lea.vmem %s4, %s196
      %v199 = vld [vmem:[%s192] sm:$0xf]
      %v200 = vld [vmem:[%s192 + $0x4] sm:$0xf]
      %v201 = vld [vmem:[%s192 + $0x8] sm:$0xf]
      %v202 = vld [vmem:[%s192 + $0xc] sm:$0xf]
      %v203 = vld [vmem:[%s192 + $0x10] sm:$0xf]
      %v204 = vld [vmem:[%s192 + $0x14] sm:$0xf]
      %v205 = vld [vmem:[%s192 + $0x18] sm:$0xf]
      %v206 = vld [vmem:[%s192 + $0x1c] sm:$0xf]
      %v207 = vld [vmem:[%s2] sm:$0xf]
      %v208 = vld [vmem:[%s2 + $0x4] sm:$0xf]
      %v209 = vld [vmem:[%s2 + $0x8] sm:$0xf]
      %v210 = vld [vmem:[%s2 + $0xc] sm:$0xf]
      %v211 = vld [vmem:[%s2 + $0x10] sm:$0xf]
      %v212 = vld [vmem:[%s2 + $0x14] sm:$0xf]
      %v213 = vld [vmem:[%s2 + $0x18] sm:$0xf]
      %v214 = vld [vmem:[%s2 + $0x1c] sm:$0xf]
      %v215 = vld [vmem:[%s2 + $0x20] sm:$0xf]
      %v216 = vld [vmem:[%s2 + $0x24] sm:$0xf]
      %v217 = vld [vmem:[%s2 + $0x28] sm:$0xf]
      %v218 = vld [vmem:[%s2 + $0x2c] sm:$0xf]
      %v219 = vld [vmem:[%s2 + $0x30] sm:$0xf]
      %v220 = vld [vmem:[%s2 + $0x34] sm:$0xf]
      %v221 = vld [vmem:[%s2 + $0x38] sm:$0xf]
      %v222 = vld [vmem:[%s2 + $0x3c] sm:$0xf]
      %v231 = vunpack.c.l.b16 %v199
      %v232 = vunpack.c.l.b16 %v200
      %v233 = vunpack.c.l.b16 %v201
      %v234 = vunpack.c.l.b16 %v202
      %v235 = vunpack.c.l.b16 %v203
      %v236 = vunpack.c.l.b16 %v204
      %v237 = vunpack.c.l.b16 %v205
      %v238 = vunpack.c.l.b16 %v206
      %v239 = vpack.c.b16 %v232, %v231
      %v240 = vpack.c.b16 %v234, %v233
      %v241 = vpack.c.b16 %v236, %v235
      %v242 = vpack.c.b16 %v238, %v237
      %v263 = vunpack.c.l.b16 %v207
      %v264 = vunpack.c.l.b16 %v208
      %v265 = vunpack.c.l.b16 %v209
      %v266 = vunpack.c.l.b16 %v210
      %v267 = vunpack.c.l.b16 %v211
      %v268 = vunpack.c.l.b16 %v212
      %v269 = vunpack.c.l.b16 %v213
      %v270 = vunpack.c.l.b16 %v214
      %v271 = vunpack.c.l.b16 %v215
      %v272 = vunpack.c.l.b16 %v216
      %v273 = vunpack.c.l.b16 %v217
      %v274 = vunpack.c.l.b16 %v218
      %v275 = vunpack.c.l.b16 %v219
      %v276 = vunpack.c.l.b16 %v220
      %v277 = vunpack.c.l.b16 %v221
      %v278 = vunpack.c.l.b16 %v222
      %v279 = vpack.c.b16 %v264, %v263
      %v280 = vpack.c.b16 %v266, %v265
      %v281 = vpack.c.b16 %v268, %v267
      %v282 = vpack.c.b16 %v270, %v269
      %v283 = vpack.c.b16 %v272, %v271
      %v284 = vpack.c.b16 %v274, %v273
      %v285 = vpack.c.b16 %v276, %v275
      %v286 = vpack.c.b16 %v278, %v277
      %295 = vmatprep.subr.bf16.mxu0 0
      %296 = vmatpush1.bf16.msra.mxu0 %v279
      %297 = vmatprep.subr.bf16.mxu0 0
      %298 = vmatpush1.bf16.msra.mxu0 %v280
      %299 = vmatprep.subr.bf16.mxu0 0
      %300 = vmatpush1.bf16.msra.mxu0 %v281
      %301 = vmatprep.subr.bf16.mxu0 0
      %302 = vmatpush1.bf16.msra.mxu0 %v282
      %303 = vmatprep.subr.bf16.mxu0 0
      %304 = vmatpush1.bf16.msra.mxu0 %v283
      %305 = vmatprep.subr.bf16.mxu0 0
      %306 = vmatpush1.bf16.msra.mxu0 %v284
      %307 = vmatprep.subr.bf16.mxu0 0
      %308 = vmatpush1.bf16.msra.mxu0 %v285
      %309 = vmatprep.subr.bf16.mxu0 0
      %310 = vmatpush1.bf16.msra.mxu0 %v286
      %311 = vmatprep.subr.bf16.mxu0 0
      %312 = vmatpush1.bf16.msra.mxu0 0
      %313 = vmatprep.subr.bf16.mxu0 0
      %314 = vmatpush1.bf16.msra.mxu0 0
      %315 = vmatprep.subr.bf16.mxu0 0
      %316 = vmatpush1.bf16.msra.mxu0 0
      %317 = vmatprep.subr.bf16.mxu0 0
      %318 = vmatpush1.bf16.msra.mxu0 0
      %319 = vmatprep.subr.bf16.mxu0 0
      %320 = vmatpush1.bf16.msra.mxu0 0
      %321 = vmatprep.subr.bf16.mxu0 0
      %322 = vmatpush1.bf16.msra.mxu0 0
      %323 = vmatprep.subr.bf16.mxu0 0
      %324 = vmatpush1.bf16.msra.mxu0 0
      %325 = vmatprep.subr.bf16.mxu0 0
      %326 = vmatpush1.bf16.msra.mxu0 0
      %327 = vmatprep.mubr.bf16.mxu0 0
      %328 = vmatmul.mubr.bf16.gmra.mrb[0].mxu0 %v239
      %v329 = vpop.f32.mrb[0].mxu0
      %v330 = vadd.f32 0.0, %v329
      %v331 = vpop.f32.mrb[0].mxu0
      %v332 = vpop.f32.mrb[0].mxu0
      %v333 = vadd.f32 0.0, %v332
      %v334 = vpop.f32.mrb[0].mxu0
      %335 = vmatprep.mubr.bf16.mxu0 0
      %336 = vmatmul.mubr.bf16.gmra.mrb[0].mxu0 %v240
      %v337 = vpop.f32.mrb[0].mxu0
      %v338 = vadd.f32 0.0, %v337
      %v339 = vpop.f32.mrb[0].mxu0
      %v340 = vpop.f32.mrb[0].mxu0
      %v341 = vadd.f32 0.0, %v340
      %v342 = vpop.f32.mrb[0].mxu0
      %343 = vmatprep.mubr.bf16.mxu0 0
      %344 = vmatmul.mubr.bf16.gmra.mrb[0].mxu0 %v241
      %v345 = vpop.f32.mrb[0].mxu0
      %v346 = vadd.f32 0.0, %v345
      %v347 = vpop.f32.mrb[0].mxu0
      %v348 = vpop.f32.mrb[0].mxu0
      %v349 = vadd.f32 0.0, %v348
      %v350 = vpop.f32.mrb[0].mxu0
      %351 = vmatprep.mubr.bf16.mxu0 0
      %352 = vmatmul.mubr.bf16.gmra.mrb[0].mxu0 %v242
      %v353 = vpop.f32.mrb[0].mxu0
      %v354 = vadd.f32 0.0, %v353
      %v355 = vpop.f32.mrb[0].mxu0
      %v356 = vpop.f32.mrb[0].mxu0
      %v357 = vadd.f32 0.0, %v356
      %v358 = vpop.f32.mrb[0].mxu0
      %359 = vdwg.mxu0
      %v360 = vunpack.c.l.bf16 %v199
      %v361 = vunpack.c.l.bf16 %v200
      %v362 = vunpack.c.l.bf16 %v201
      %v363 = vunpack.c.l.bf16 %v202
      %v364 = vunpack.c.l.bf16 %v203
      %v365 = vunpack.c.l.bf16 %v204
      %v366 = vunpack.c.l.bf16 %v205
      %v367 = vunpack.c.l.bf16 %v206
      %v368 = vld [vmem:[%s1] sm:$0x1]
      %v370 = vlaneseq
      %v371 = vshrl.u32 %v370, 7
      %v372 = vsub.s32 0, %v371
      %v373 = vrot.slane %v368, %v372
      %v375 = vmul.f32 %v360, %v373
      %v376 = vmul.f32 %v361, %v373
      %v377 = vmul.f32 %v362, %v373
      %v378 = vmul.f32 %v363, %v373
      %v379 = vmul.f32 %v364, %v373
      %v380 = vmul.f32 %v365, %v373
      %v381 = vmul.f32 %v366, %v373
      %v382 = vmul.f32 %v367, %v373
      %383 = vadd.xlane.f32.xlu0 %v375
      %v384 = vpop.xlane.xlu0 %383
      %385 = vadd.xlane.f32.xlu0 %v376
      %v386 = vpop.xlane.xlu0 %385
      %387 = vadd.xlane.f32.xlu0 %v377
      %v388 = vpop.xlane.xlu0 %387
      %389 = vadd.xlane.f32.xlu0 %v378
      %v390 = vpop.xlane.xlu0 %389
      %391 = vadd.xlane.f32.xlu0 %v379
      %v392 = vpop.xlane.xlu0 %391
      %393 = vadd.xlane.f32.xlu0 %v380
      %v394 = vpop.xlane.xlu0 %393
      %395 = vadd.xlane.f32.xlu0 %v381
      %v396 = vpop.xlane.xlu0 %395
      %397 = vadd.xlane.f32.xlu0 %v382
      %v398 = vpop.xlane.xlu0 %397
      %v407 = vlaneseq
      %v408 = vand.u32 %v407, 127
      %v409 = vlaneseq
      %v410 = vshrl.u32 %v409, 7
      %v411 = vsub.s32 %v408, %v410
      %v412 = vrot.slane %v384, %v411
      %v413 = vlaneseq
      %v414 = vshrl.u32 %v413, 7
      %v415 = vsub.s32 %v408, %v414
      %v416 = vrot.slane %v386, %v415
      %v417 = vlaneseq
      %v418 = vshrl.u32 %v417, 7
      %v419 = vsub.s32 %v408, %v418
      %v420 = vrot.slane %v388, %v419
      %v421 = vlaneseq
      %v422 = vshrl.u32 %v421, 7
      %v423 = vsub.s32 %v408, %v422
      %v424 = vrot.slane %v390, %v423
      %v425 = vlaneseq
      %v426 = vshrl.u32 %v425, 7
      %v427 = vsub.s32 %v408, %v426
      %v428 = vrot.slane %v392, %v427
      %v429 = vlaneseq
      %v430 = vshrl.u32 %v429, 7
      %v431 = vsub.s32 %v408, %v430
      %v432 = vrot.slane %v394, %v431
      %v433 = vlaneseq
      %v434 = vshrl.u32 %v433, 7
      %v435 = vsub.s32 %v408, %v434
      %v436 = vrot.slane %v396, %v435
      %v437 = vlaneseq
      %v438 = vshrl.u32 %v437, 7
      %v439 = vsub.s32 %v408, %v438
      %v440 = vrot.slane %v398, %v439
      %vm441 = vcmask 1041409
      %v442 = vsel %vm441, %v416, %v412
      %vm443 = vcmask 1042434
      %v444 = vsel %vm443, %v420, %v442
      %vm445 = vcmask 1043459
      %v446 = vsel %vm445, %v424, %v444
      %vm447 = vcmask 1044484
      %v448 = vsel %vm447, %v428, %v446
      %vm449 = vcmask 1045509
      %v450 = vsel %vm449, %v432, %v448
      %vm451 = vcmask 1046534
      %v452 = vsel %vm451, %v436, %v450
      %vm453 = vcmask 1047559
      %v454 = vsel %vm453, %v440, %v452
      %vm456 = vcmask 64512
      %v457 = vsel %vm456, %v454, -inf
      %458 = vmax.xlane.f32.xlu0 %v457
      %v459 = vpop.xlane.xlu0 %458
      %v461 = vlaneseq
      %v462 = vshrl.u32 %v461, 7
      %v463 = vsub.s32 0, %v462
      %v464 = vrot.slane %v459, %v463
      %v465 = vlaneseq
      %v466 = vshrl.u32 %v465, 7
      %v467 = vsub.s32 1, %v466
      %v468 = vrot.slane %v459, %v467
      %v469 = vlaneseq
      %v470 = vshrl.u32 %v469, 7
      %v471 = vsub.s32 2, %v470
      %v472 = vrot.slane %v459, %v471
      %v473 = vlaneseq
      %v474 = vshrl.u32 %v473, 7
      %v475 = vsub.s32 3, %v474
      %v476 = vrot.slane %v459, %v475
      %v477 = vlaneseq
      %v478 = vshrl.u32 %v477, 7
      %v479 = vsub.s32 4, %v478
      %v480 = vrot.slane %v459, %v479
      %v481 = vlaneseq
      %v482 = vshrl.u32 %v481, 7
      %v483 = vsub.s32 5, %v482
      %v484 = vrot.slane %v459, %v483
      %v485 = vlaneseq
      %v486 = vshrl.u32 %v485, 7
      %v487 = vsub.s32 6, %v486
      %v488 = vrot.slane %v459, %v487
      %v489 = vlaneseq
      %v490 = vshrl.u32 %v489, 7
      %v491 = vsub.s32 7, %v490
      %v492 = vrot.slane %v459, %v491
      %v501 = vsub.f32 %v384, %v464
      %v502 = vsub.f32 %v386, %v468
      %v503 = vsub.f32 %v388, %v472
      %v504 = vsub.f32 %v390, %v476
      %v505 = vsub.f32 %v392, %v480
      %v506 = vsub.f32 %v394, %v484
      %v507 = vsub.f32 %v396, %v488
      %v508 = vsub.f32 %v398, %v492
      %v509 = vmul.f32 %v501, 1.442695
      %v510 = vpow.pop %v509
      %v511 = vmul.f32 %v502, 1.442695
      %v512 = vpow.pop %v511
      %v513 = vmul.f32 %v503, 1.442695
      %v514 = vpow.pop %v513
      %v515 = vmul.f32 %v504, 1.442695
      %v516 = vpow.pop %v515
      %v517 = vmul.f32 %v505, 1.442695
      %v518 = vpow.pop %v517
      %v519 = vmul.f32 %v506, 1.442695
      %v520 = vpow.pop %v519
      %v521 = vmul.f32 %v507, 1.442695
      %v522 = vpow.pop %v521
      %v523 = vmul.f32 %v508, 1.442695
      %v524 = vpow.pop %v523
      %533 = vset.pattern.permute.xlu0 0
      %534 = vperm.xlu0 %533, %v510
      %v535 = vpop.permute.xlu0 %534
      %536 = vset.pattern.permute.xlu0 0
      %537 = vperm.xlu0 %536, %v512
      %v538 = vpop.permute.xlu0 %537
      %539 = vset.pattern.permute.xlu0 0
      %540 = vperm.xlu0 %539, %v514
      %v541 = vpop.permute.xlu0 %540
      %542 = vset.pattern.permute.xlu0 0
      %543 = vperm.xlu0 %542, %v516
      %v544 = vpop.permute.xlu0 %543
      %545 = vset.pattern.permute.xlu0 0
      %546 = vperm.xlu0 %545, %v518
      %v547 = vpop.permute.xlu0 %546
      %548 = vset.pattern.permute.xlu0 0
      %549 = vperm.xlu0 %548, %v520
      %v550 = vpop.permute.xlu0 %549
      %551 = vset.pattern.permute.xlu0 0
      %552 = vperm.xlu0 %551, %v522
      %v553 = vpop.permute.xlu0 %552
      %554 = vset.pattern.permute.xlu0 0
      %555 = vperm.xlu0 %554, %v524
      %v556 = vpop.permute.xlu0 %555
      %v557 = vlaneseq
      %v558 = vshrl.u32 %v557, 7
      %v559 = vsub.s32 %v408, %v558
      %v560 = vrot.slane %v535, %v559
      %v561 = vlaneseq
      %v562 = vshrl.u32 %v561, 7
      %v563 = vsub.s32 %v408, %v562
      %v564 = vrot.slane %v538, %v563
      %v565 = vlaneseq
      %v566 = vshrl.u32 %v565, 7
      %v567 = vsub.s32 %v408, %v566
      %v568 = vrot.slane %v541, %v567
      %v569 = vlaneseq
      %v570 = vshrl.u32 %v569, 7
      %v571 = vsub.s32 %v408, %v570
      %v572 = vrot.slane %v544, %v571
      %v573 = vlaneseq
      %v574 = vshrl.u32 %v573, 7
      %v575 = vsub.s32 %v408, %v574
      %v576 = vrot.slane %v547, %v575
      %v577 = vlaneseq
      %v578 = vshrl.u32 %v577, 7
      %v579 = vsub.s32 %v408, %v578
      %v580 = vrot.slane %v550, %v579
      %v581 = vlaneseq
      %v582 = vshrl.u32 %v581, 7
      %v583 = vsub.s32 %v408, %v582
      %v584 = vrot.slane %v553, %v583
      %v585 = vlaneseq
      %v586 = vshrl.u32 %v585, 7
      %v587 = vsub.s32 %v408, %v586
      %v588 = vrot.slane %v556, %v587
      %v589 = vsel %vm441, %v564, %v560
      %v590 = vsel %vm443, %v568, %v589
      %v591 = vsel %vm445, %v572, %v590
      %v592 = vsel %vm447, %v576, %v591
      %v593 = vsel %vm449, %v580, %v592
      %v594 = vsel %vm451, %v584, %v593
      %v595 = vsel %vm453, %v588, %v594
      %v597 = vsel %vm456, %v595, 0.0
      %598 = vadd.xlane.f32.xlu0 %v597
      %v599 = vpop.xlane.xlu0 %598
      %v600 = vrcp.pop %v599
      %v602 = vlaneseq
      %v603 = vshrl.u32 %v602, 7
      %v604 = vsub.s32 0, %v603
      %v605 = vrot.slane %v600, %v604
      %v606 = vlaneseq
      %v607 = vshrl.u32 %v606, 7
      %v608 = vsub.s32 1, %v607
      %v609 = vrot.slane %v600, %v608
      %v610 = vlaneseq
      %v611 = vshrl.u32 %v610, 7
      %v612 = vsub.s32 2, %v611
      %v613 = vrot.slane %v600, %v612
      %v614 = vlaneseq
      %v615 = vshrl.u32 %v614, 7
      %v616 = vsub.s32 3, %v615
      %v617 = vrot.slane %v600, %v616
      %v618 = vlaneseq
      %v619 = vshrl.u32 %v618, 7
      %v620 = vsub.s32 4, %v619
      %v621 = vrot.slane %v600, %v620
      %v622 = vlaneseq
      %v623 = vshrl.u32 %v622, 7
      %v624 = vsub.s32 5, %v623
      %v625 = vrot.slane %v600, %v624
      %v626 = vlaneseq
      %v627 = vshrl.u32 %v626, 7
      %v628 = vsub.s32 6, %v627
      %v629 = vrot.slane %v600, %v628
      %v630 = vlaneseq
      %v631 = vshrl.u32 %v630, 7
      %v632 = vsub.s32 7, %v631
      %v633 = vrot.slane %v600, %v632
      %v642 = vmul.f32 %v510, %v605
      %v643 = vmul.f32 %v512, %v609
      %v644 = vmul.f32 %v514, %v613
      %v645 = vmul.f32 %v516, %v617
      %v646 = vmul.f32 %v518, %v621
      %v647 = vmul.f32 %v520, %v625
      %v648 = vmul.f32 %v522, %v629
      %v649 = vmul.f32 %v524, %v633
      %651 = vset.pattern.permute.xlu0 0
      %652 = vperm.xlu0 %651, %v642
      %v653 = vpop.permute.xlu0 %652
      %656 = vset.pattern.permute.xlu0 0
      %657 = vperm.xlu0 %656, %v643
      %v658 = vpop.permute.xlu0 %657
      %661 = vset.pattern.permute.xlu0 0
      %662 = vperm.xlu0 %661, %v644
      %v663 = vpop.permute.xlu0 %662
      %666 = vset.pattern.permute.xlu0 0
      %667 = vperm.xlu0 %666, %v645
      %v668 = vpop.permute.xlu0 %667
      %671 = vset.pattern.permute.xlu0 0
      %672 = vperm.xlu0 %671, %v646
      %v673 = vpop.permute.xlu0 %672
      %676 = vset.pattern.permute.xlu0 0
      %677 = vperm.xlu0 %676, %v647
      %v678 = vpop.permute.xlu0 %677
      %681 = vset.pattern.permute.xlu0 0
      %682 = vperm.xlu0 %681, %v648
      %v683 = vpop.permute.xlu0 %682
      %686 = vset.pattern.permute.xlu0 0
      %687 = vperm.xlu0 %686, %v649
      %v688 = vpop.permute.xlu0 %687
      %v690 = vmul.f32 %v653, %v330
      %v691 = vmul.f32 %v658, %v333
      %v692 = vmul.f32 %v663, %v338
      %v693 = vmul.f32 %v668, %v341
      %v694 = vmul.f32 %v673, %v346
      %v695 = vmul.f32 %v678, %v349
      %v696 = vmul.f32 %v683, %v354
      %v697 = vmul.f32 %v688, %v357
      %vm698 = vcmask 261120
      %v699 = vsel %vm698, %v690, 0.0
      %v700 = vrot.slane %v699, 4
      %v701 = vadd.f32 %v699, %v700
      %v702 = vrot.slane %v701, 2
      %v703 = vadd.f32 %v701, %v702
      %v704 = vrot.slane %v703, 1
      %v705 = vadd.f32 %v703, %v704
      %v706 = vsel %vm698, %v691, 0.0
      %v707 = vrot.slane %v706, 4
      %v708 = vadd.f32 %v706, %v707
      %v709 = vrot.slane %v708, 2
      %v710 = vadd.f32 %v708, %v709
      %v711 = vrot.slane %v710, 1
      %v712 = vadd.f32 %v710, %v711
      %v713 = vsel %vm698, %v692, 0.0
      %v714 = vrot.slane %v713, 4
      %v715 = vadd.f32 %v713, %v714
      %v716 = vrot.slane %v715, 2
      %v717 = vadd.f32 %v715, %v716
      %v718 = vrot.slane %v717, 1
      %v719 = vadd.f32 %v717, %v718
      %v720 = vsel %vm698, %v693, 0.0
      %v721 = vrot.slane %v720, 4
      %v722 = vadd.f32 %v720, %v721
      %v723 = vrot.slane %v722, 2
      %v724 = vadd.f32 %v722, %v723
      %v725 = vrot.slane %v724, 1
      %v726 = vadd.f32 %v724, %v725
      %v727 = vsel %vm698, %v694, 0.0
      %v728 = vrot.slane %v727, 4
      %v729 = vadd.f32 %v727, %v728
      %v730 = vrot.slane %v729, 2
      %v731 = vadd.f32 %v729, %v730
      %v732 = vrot.slane %v731, 1
      %v733 = vadd.f32 %v731, %v732
      %v734 = vsel %vm698, %v695, 0.0
      %v735 = vrot.slane %v734, 4
      %v736 = vadd.f32 %v734, %v735
      %v737 = vrot.slane %v736, 2
      %v738 = vadd.f32 %v736, %v737
      %v739 = vrot.slane %v738, 1
      %v740 = vadd.f32 %v738, %v739
      %v741 = vsel %vm698, %v696, 0.0
      %v742 = vrot.slane %v741, 4
      %v743 = vadd.f32 %v741, %v742
      %v744 = vrot.slane %v743, 2
      %v745 = vadd.f32 %v743, %v744
      %v746 = vrot.slane %v745, 1
      %v747 = vadd.f32 %v745, %v746
      %v748 = vsel %vm698, %v697, 0.0
      %v749 = vrot.slane %v748, 4
      %v750 = vadd.f32 %v748, %v749
      %v751 = vrot.slane %v750, 2
      %v752 = vadd.f32 %v750, %v751
      %v753 = vrot.slane %v752, 1
      %v754 = vadd.f32 %v752, %v753
      %v755 = vld [vmem:[%s3] sm:$0x1]
      %v757 = vlaneseq
      %v758 = vshrl.u32 %v757, 7
      %v759 = vsub.s32 0, %v758
      %v760 = vrot.slane %v755, %v759
      %v762 = vadd.f32 %v705, %v760
      %v763 = vadd.f32 %v712, %v760
      %v764 = vadd.f32 %v719, %v760
      %v765 = vadd.f32 %v726, %v760
      %v766 = vadd.f32 %v733, %v760
      %v767 = vadd.f32 %v740, %v760
      %v768 = vadd.f32 %v747, %v760
      %v769 = vadd.f32 %v754, %v760
      %v778 = vrot.slane %v763, 7
      %v779 = vsel %vm441, %v778, %v762
      %v780 = vrot.slane %v764, 6
      %v781 = vsel %vm443, %v780, %v779
      %v782 = vrot.slane %v765, 5
      %v783 = vsel %vm445, %v782, %v781
      %v784 = vrot.slane %v766, 4
      %v785 = vsel %vm447, %v784, %v783
      %v786 = vrot.slane %v767, 3
      %v787 = vsel %vm449, %v786, %v785
      %v788 = vrot.slane %v768, 2
      %v789 = vsel %vm451, %v788, %v787
      %v790 = vrot.slane %v769, 1
      %v791 = vsel %vm453, %v790, %v789
      %793 = vst.msk [vmem:[%s197] sm:$0xff] %vm698, %v791
      %p794 = scmp.lt.s32.totalorder %s15, 1
      %s795 = scalar_select %p794, %s15, 1
      %s796 = smul.addr %s795, 8
      %s797 = scalar_lea.vmem %s4, %s796
      // Predicated region
      $region37: #{model_forward.2} parent=35 // pred_check
        %p798 = pneg %p122
      $region38: #{model_forward.2} parent=35 // pred_check_branch
        %800 = sbr.rel (%p798) target = $region40
      $region39: #{model_forward.2} parent=35 // pred_region
        _
      $region40: #{model_forward.2} parent=35 // pred_fallthru
        _
    $region36: #{model_forward.2} parent=5 // pred_fallthru
      _
    %p801 = scmp.le.s32.totalorder 2, %s10
    // Predicated region
    $region41: #{model_forward.2} parent=5 // pred_check
      %p802 = pneg %p801
    $region42: #{model_forward.2} parent=5 // pred_check_branch
      %804 = sbr.rel (%p802) target = $region44
    $region43: #{model_forward.2} parent=5 // pred_region
      %s805 = ssub.s32 %s10, 2
      // Predicated region
      $region45: #{model_forward.2} parent=43 // pred_check
        %p806 = pneg %p128
      $region46: #{model_forward.2} parent=43 // pred_check_branch
        %808 = sbr.rel (%p806) target = $region48
      $region47: #{model_forward.2} parent=43 // pred_region
        %p809 = scmp.lt.s32.totalorder %s16, 1
        %s810 = scalar_select %p809, %s16, 1
        %s811 = smul.addr %s810, 8
        %s812 = scalar_lea.vmem %s4, %s811
      $region48: #{model_forward.2} parent=43 // pred_fallthru
        _
    $region44: #{model_forward.2} parent=5 // pred_fallthru
      _
  $region6: #{model_forward.2} parent=0 // loop_footer
    %s14 = sadd.s32 1, %s10
  $region7: #{model_forward.2} parent=0 // loop_footer_branch
    %9 = sbr.rel target = $region3
  $region8: #{model_forward.2} parent=0 // loop_exit
    _

// kernel: model_forward.3
$region0: #{model_forward.3}
  #allocation0 [shape = 'u32[]', space=smem, size = 0x4, offset = 0x4, fixed_abs, tag = 'smem constant byte address 0x4 - core index']
  #allocation1 [shape = 'u32[144,128]{1,0:T(1,128)}', space=vmem, size = 0x12000, scoped, tag = 'internal scratch']
  %s0 = inlined_call_operand.vmem [shape: f32[16,32], index: 0, kind: input, shape index: {}]
  %s1 = inlined_call_operand.vmem [shape: bf16[16,16], index: 1, kind: input, shape index: {}]
  %s2 = inlined_call_operand.vmem [shape: bf16[32,32], index: 2, kind: input, shape index: {}]
  %s3 = inlined_call_operand.vmem [shape: f32[1,32], index: 3, kind: input, shape index: {}]
  %s4 = inlined_call_operand.vmem [shape: bf16[32,32], index: 4, kind: input, shape index: {}]
  %s5 = inlined_call_operand.vmem [shape: f32[1,32], index: 5, kind: input, shape index: {}]
  %s6 = inlined_call_operand.vmem [shape: bf16[32,32], index: 6, kind: input, shape index: {}]
  %s7 = inlined_call_operand.vmem [shape: f32[1,32], index: 7, kind: input, shape index: {}]
  %s8 = inlined_call_operand.vmem [shape: bf16[32,32], index: 8, kind: input, shape index: {}]
  %s9 = inlined_call_operand.vmem [shape: f32[1,32], index: 9, kind: input, shape index: {}]
  %s10 = inlined_call_operand.hbm [shape: f32[16,64], index: 10, kind: output, shape index: {}]
  %s11 = sld [smem:[#allocation0]]
  $region50: #{model_forward.3} parent=0
    _
  %s13 = ssub.s32 1, %s11
  %s14 = scalar_select 0, %s13, %s11
  $region1: #{model_forward.3} parent=0
    #allocation2 [shape = 'u8[8192]{0}', space=vmem, size = 0x2000, scoped, tag = 'output window, operand 0, single buffered']
    #allocation3 [shape = 's32[1]{0}', space=sflag, size = 0x4, scoped, tag = 'scoped memory for model_forward.3']
    %15 = vsyncpa [#allocation3], 0
    // Predicated region
    $region2: #{model_forward.3} parent=1 // pred_check
      _
    $region3: #{model_forward.3} parent=1 // pred_check_branch
      %17 = sbr.rel (0) target = $region5
    $region4: #{model_forward.3} parent=1 // pred_region
      _
    $region5: #{model_forward.3} parent=1 // pred_fallthru
      _
    // Predicated region
    $region6: #{model_forward.3} parent=1 // pred_check
      _
    $region7: #{model_forward.3} parent=1 // pred_check_branch
      %19 = sbr.rel (0) target = $region9
    $region8: #{model_forward.3} parent=1 // pred_region
      _
    $region9: #{model_forward.3} parent=1 // pred_fallthru
      _
    // Predicated region
    $region10: #{model_forward.3} parent=1 // pred_check
      _
    $region11: #{model_forward.3} parent=1 // pred_check_branch
      %21 = sbr.rel (0) target = $region13
    $region12: #{model_forward.3} parent=1 // pred_region
      _
    $region13: #{model_forward.3} parent=1 // pred_fallthru
      _
    // Predicated region
    $region14: #{model_forward.3} parent=1 // pred_check
      _
    $region15: #{model_forward.3} parent=1 // pred_check_branch
      %23 = sbr.rel (0) target = $region17
    $region16: #{model_forward.3} parent=1 // pred_region
      _
    $region17: #{model_forward.3} parent=1 // pred_fallthru
      _
    // Predicated region
    $region18: #{model_forward.3} parent=1 // pred_check
      _
    $region19: #{model_forward.3} parent=1 // pred_check_branch
      %25 = sbr.rel (0) target = $region21
    $region20: #{model_forward.3} parent=1 // pred_region
      _
    $region21: #{model_forward.3} parent=1 // pred_fallthru
      _
    // Predicated region
    $region22: #{model_forward.3} parent=1 // pred_check
      _
    $region23: #{model_forward.3} parent=1 // pred_check_branch
      %27 = sbr.rel (0) target = $region25
    $region24: #{model_forward.3} parent=1 // pred_region
      _
    $region25: #{model_forward.3} parent=1 // pred_fallthru
      _
    // Predicated region
    $region26: #{model_forward.3} parent=1 // pred_check
      _
    $region27: #{model_forward.3} parent=1 // pred_check_branch
      %29 = sbr.rel (0) target = $region29
    $region28: #{model_forward.3} parent=1 // pred_region
      _
    $region29: #{model_forward.3} parent=1 // pred_fallthru
      _
    // Predicated region
    $region30: #{model_forward.3} parent=1 // pred_check
      _
    $region31: #{model_forward.3} parent=1 // pred_check_branch
      %31 = sbr.rel (0) target = $region33
    $region32: #{model_forward.3} parent=1 // pred_region
      _
    $region33: #{model_forward.3} parent=1 // pred_fallthru
      _
    // Predicated region
    $region34: #{model_forward.3} parent=1 // pred_check
      _
    $region35: #{model_forward.3} parent=1 // pred_check_branch
      %33 = sbr.rel (0) target = $region37
    $region36: #{model_forward.3} parent=1 // pred_region
      _
    $region37: #{model_forward.3} parent=1 // pred_fallthru
      _
    // Predicated region
    $region38: #{model_forward.3} parent=1 // pred_check
      _
    $region39: #{model_forward.3} parent=1 // pred_check_branch
      %35 = sbr.rel (0) target = $region41
    $region40: #{model_forward.3} parent=1 // pred_region
      _
    $region41: #{model_forward.3} parent=1 // pred_fallthru
      _
    %v37 = vld [vmem:[%s0] sm:$0xff]
    %v38 = vld [vmem:[%s0 + $0x8] sm:$0xff]
    %v39 = vld [vmem:[%s1] sm:$0xf]
    %v40 = vld [vmem:[%s1 + $0x4] sm:$0xf]
    %v41 = vpack.c.bf16 %v38, %v37
    %v42 = vld [vmem:[%s2] sm:$0xf]
    %v43 = vld [vmem:[%s2 + $0x4] sm:$0xf]
    %v44 = vld [vmem:[%s2 + $0x8] sm:$0xf]
    %v45 = vld [vmem:[%s2 + $0xc] sm:$0xf]
    %v50 = vunpack.c.l.b16 %v42
    %v51 = vunpack.c.l.b16 %v43
    %v52 = vunpack.c.l.b16 %v44
    %v53 = vunpack.c.l.b16 %v45
    %v54 = vpack.c.b16 %v51, %v50
    %v55 = vpack.c.b16 %v53, %v52
    %vm58 = vcmask 261120
    %v60 = vsel %vm58, %v41, 0
    %62 = vmatprep.subr.bf16.mxu0 0
    %63 = vmatpush1.bf16.msra.mxu0 %v54
    %64 = vmatprep.subr.bf16.mxu0 0
    %65 = vmatpush1.bf16.msra.mxu0 %v55
    %66 = vmatprep.subr.bf16.mxu0 0
    %67 = vmatpush1.bf16.msra.mxu0 0
    %68 = vmatprep.subr.bf16.mxu0 0
    %69 = vmatpush1.bf16.msra.mxu0 0
    %70 = vmatprep.subr.bf16.mxu0 0
    %71 = vmatpush1.bf16.msra.mxu0 0
    %72 = vmatprep.subr.bf16.mxu0 0
    %73 = vmatpush1.bf16.msra.mxu0 0
    %74 = vmatprep.subr.bf16.mxu0 0
    %75 = vmatpush1.bf16.msra.mxu0 0
    %76 = vmatprep.subr.bf16.mxu0 0
    %77 = vmatpush1.bf16.msra.mxu0 0
    %78 = vmatprep.subr.bf16.mxu0 0
    %79 = vmatpush1.bf16.msra.mxu0 0
    %80 = vmatprep.subr.bf16.mxu0 0
    %81 = vmatpush1.bf16.msra.mxu0 0
    %82 = vmatprep.subr.bf16.mxu0 0
    %83 = vmatpush1.bf16.msra.mxu0 0
    %84 = vmatprep.subr.bf16.mxu0 0
    %85 = vmatpush1.bf16.msra.mxu0 0
    %86 = vmatprep.subr.bf16.mxu0 0
    %87 = vmatpush1.bf16.msra.mxu0 0
    %88 = vmatprep.subr.bf16.mxu0 0
    %89 = vmatpush1.bf16.msra.mxu0 0
    %90 = vmatprep.subr.bf16.mxu0 0
    %91 = vmatpush1.bf16.msra.mxu0 0
    %92 = vmatprep.subr.bf16.mxu0 0
    %93 = vmatpush1.bf16.msra.mxu0 0
    %94 = vmatprep.mubr.bf16.mxu0 0
    %95 = vmatmul.mubr.bf16.gmra.mrb[0].mxu0 %v60
    %v96 = vpop.f32.mrb[0].mxu0
    %v97 = vadd.f32 0.0, %v96
    %v98 = vpop.f32.mrb[0].mxu0
    %v99 = vpop.f32.mrb[0].mxu0
    %v100 = vadd.f32 0.0, %v99
    %v101 = vpop.f32.mrb[0].mxu0
    %102 = vdwg.mxu0
    %v103 = vpack.c.bf16 %v100, %v97
    %v104 = vld [vmem:[%s3] sm:$0x1]
    %v106 = vlaneseq
    %v107 = vshrl.u32 %v106, 7
    %v108 = vsub.s32 0, %v107
    %v109 = vrot.slane %v104, %v108
    %v113 = vunpack.c.l.b16 %v39
    %v114 = vunpack.c.l.b16 %v40
    %v115 = vpack.c.b16 %v114, %v113
    %vm116 = vcmask 130048
    %v118 = vsel %vm116, %v115, 0
    %120 = vmatprep.subr.bf16.mxu0 0
    %121 = vmatpush1.bf16.msra.mxu0 %v103
    %122 = vmatprep.subr.bf16.mxu0 0
    %123 = vmatpush1.bf16.msra.mxu0 0
    %124 = vmatprep.subr.bf16.mxu0 0
    %125 = vmatpush1.bf16.msra.mxu0 0
    %126 = vmatprep.subr.bf16.mxu0 0
    %127 = vmatpush1.bf16.msra.mxu0 0
    %128 = vmatprep.subr.bf16.mxu0 0
    %129 = vmatpush1.bf16.msra.mxu0 0
    %130 = vmatprep.subr.bf16.mxu0 0
    %131 = vmatpush1.bf16.msra.mxu0 0
    %132 = vmatprep.subr.bf16.mxu0 0
    %133 = vmatpush1.bf16.msra.mxu0 0
    %134 = vmatprep.subr.bf16.mxu0 0
    %135 = vmatpush1.bf16.msra.mxu0 0
    %136 = vmatprep.subr.bf16.mxu0 0
    %137 = vmatpush1.bf16.msra.mxu0 0
    %138 = vmatprep.subr.bf16.mxu0 0
    %139 = vmatpush1.bf16.msra.mxu0 0
    %140 = vmatprep.subr.bf16.mxu0 0
    %141 = vmatpush1.bf16.msra.mxu0 0
    %142 = vmatprep.subr.bf16.mxu0 0
    %143 = vmatpush1.bf16.msra.mxu0 0
    %144 = vmatprep.subr.bf16.mxu0 0
    %145 = vmatpush1.bf16.msra.mxu0 0
    %146 = vmatprep.subr.bf16.mxu0 0
    %147 = vmatpush1.bf16.msra.mxu0 0
    %148 = vmatprep.subr.bf16.mxu0 0
    %149 = vmatpush1.bf16.msra.mxu0 0
    %150 = vmatprep.subr.bf16.mxu0 0
    %151 = vmatpush1.bf16.msra.mxu0 0
    %152 = vmatprep.mubr.bf16.mxu0 0
    %153 = vmatmul.mubr.bf16.gmra.mrb[0].mxu0 %v118
    %v154 = vpop.f32.mrb[0].mxu0
    %v155 = vadd.f32 %v109, %v154
    %v156 = vpop.f32.mrb[0].mxu0
    %v157 = vpop.f32.mrb[0].mxu0
    %v158 = vadd.f32 %v109, %v157
    %v159 = vpop.f32.mrb[0].mxu0
    %160 = vdwg.mxu0
    %v161 = vmax.f32 %v155, 0.0
    %v162 = vmax.f32 %v158, 0.0
    %v163 = vpack.c.bf16 %v162, %v161
    %v164 = vld [vmem:[%s4] sm:$0xf]
    %v165 = vld [vmem:[%s4 + $0x4] sm:$0xf]
    %v166 = vld [vmem:[%s4 + $0x8] sm:$0xf]
    %v167 = vld [vmem:[%s4 + $0xc] sm:$0xf]
    %v172 = vunpack.c.l.b16 %v164
    %v173 = vunpack.c.l.b16 %v165
    %v174 = vunpack.c.l.b16 %v166
    %v175 = vunpack.c.l.b16 %v167
    %v176 = vpack.c.b16 %v173, %v172
    %v177 = vpack.c.b16 %v175, %v174
    %v181 = vsel %vm58, %v163, 0
    %183 = vmatprep.subr.bf16.mxu0 0
    %184 = vmatpush1.bf16.msra.mxu0 %v176
    %185 = vmatprep.subr.bf16.mxu0 0
    %186 = vmatpush1.bf16.msra.mxu0 %v177
    %187 = vmatprep.subr.bf16.mxu0 0
    %188 = vmatpush1.bf16.msra.mxu0 0
    %189 = vmatprep.subr.bf16.mxu0 0
    %190 = vmatpush1.bf16.msra.mxu0 0
    %191 = vmatprep.subr.bf16.mxu0 0
    %192 = vmatpush1.bf16.msra.mxu0 0
    %193 = vmatprep.subr.bf16.mxu0 0
    %194 = vmatpush1.bf16.msra.mxu0 0
    %195 = vmatprep.subr.bf16.mxu0 0
    %196 = vmatpush1.bf16.msra.mxu0 0
    %197 = vmatprep.subr.bf16.mxu0 0
    %198 = vmatpush1.bf16.msra.mxu0 0
    %199 = vmatprep.subr.bf16.mxu0 0
    %200 = vmatpush1.bf16.msra.mxu0 0
    %201 = vmatprep.subr.bf16.mxu0 0
    %202 = vmatpush1.bf16.msra.mxu0 0
    %203 = vmatprep.subr.bf16.mxu0 0
    %204 = vmatpush1.bf16.msra.mxu0 0
    %205 = vmatprep.subr.bf16.mxu0 0
    %206 = vmatpush1.bf16.msra.mxu0 0
    %207 = vmatprep.subr.bf16.mxu0 0
    %208 = vmatpush1.bf16.msra.mxu0 0
    %209 = vmatprep.subr.bf16.mxu0 0
    %210 = vmatpush1.bf16.msra.mxu0 0
    %211 = vmatprep.subr.bf16.mxu0 0
    %212 = vmatpush1.bf16.msra.mxu0 0
    %213 = vmatprep.subr.bf16.mxu0 0
    %214 = vmatpush1.bf16.msra.mxu0 0
    %215 = vmatprep.mubr.bf16.mxu0 0
    %216 = vmatmul.mubr.bf16.gmra.mrb[0].mxu0 %v181
    %v217 = vpop.f32.mrb[0].mxu0
    %v218 = vadd.f32 0.0, %v217
    %v219 = vpop.f32.mrb[0].mxu0
    %v220 = vpop.f32.mrb[0].mxu0
    %v221 = vadd.f32 0.0, %v220
    %v222 = vpop.f32.mrb[0].mxu0
    %223 = vdwg.mxu0
    %v224 = vpack.c.bf16 %v221, %v218
    %v225 = vld [vmem:[%s5] sm:$0x1]
    %v227 = vlaneseq
    %v228 = vshrl.u32 %v227, 7
    %v229 = vsub.s32 0, %v228
    %v230 = vrot.slane %v225, %v229
    %232 = vmatprep.subr.bf16.mxu0 0
    %233 = vmatpush1.bf16.msra.mxu0 %v224
    %234 = vmatprep.subr.bf16.mxu0 0
    %235 = vmatpush1.bf16.msra.mxu0 0
    %236 = vmatprep.subr.bf16.mxu0 0
    %237 = vmatpush1.bf16.msra.mxu0 0
    %238 = vmatprep.subr.bf16.mxu0 0
    %239 = vmatpush1.bf16.msra.mxu0 0
    %240 = vmatprep.subr.bf16.mxu0 0
    %241 = vmatpush1.bf16.msra.mxu0 0
    %242 = vmatprep.subr.bf16.mxu0 0
    %243 = vmatpush1.bf16.msra.mxu0 0
    %244 = vmatprep.subr.bf16.mxu0 0
    %245 = vmatpush1.bf16.msra.mxu0 0
    %246 = vmatprep.subr.bf16.mxu0 0
    %247 = vmatpush1.bf16.msra.mxu0 0
    %248 = vmatprep.subr.bf16.mxu0 0
    %249 = vmatpush1.bf16.msra.mxu0 0
    %250 = vmatprep.subr.bf16.mxu0 0
    %251 = vmatpush1.bf16.msra.mxu0 0
    %252 = vmatprep.subr.bf16.mxu0 0
    %253 = vmatpush1.bf16.msra.mxu0 0
    %254 = vmatprep.subr.bf16.mxu0 0
    %255 = vmatpush1.bf16.msra.mxu0 0
    %256 = vmatprep.subr.bf16.mxu0 0
    %257 = vmatpush1.bf16.msra.mxu0 0
    %258 = vmatprep.subr.bf16.mxu0 0
    %259 = vmatpush1.bf16.msra.mxu0 0
    %260 = vmatprep.subr.bf16.mxu0 0
    %261 = vmatpush1.bf16.msra.mxu0 0
    %262 = vmatprep.subr.bf16.mxu0 0
    %263 = vmatpush1.bf16.msra.mxu0 0
    %264 = vmatprep.mubr.bf16.mxu0 0
    %265 = vmatmul.mubr.bf16.gmra.mrb[0].mxu0 %v118
    %v266 = vpop.f32.mrb[0].mxu0
    %v267 = vadd.f32 %v230, %v266
    %v268 = vpop.f32.mrb[0].mxu0
    %v269 = vpop.f32.mrb[0].mxu0
    %v270 = vadd.f32 %v230, %v269
    %v271 = vpop.f32.mrb[0].mxu0
    %272 = vdwg.mxu0
    %v273 = vadd.f32 %v267, %v37
    %v274 = vadd.f32 %v270, %v38
    %v275 = vpack.c.bf16 %v274, %v273
    %v276 = vld [vmem:[%s6] sm:$0xf]
    %v277 = vld [vmem:[%s6 + $0x4] sm:$0xf]
    %v278 = vld [vmem:[%s6 + $0x8] sm:$0xf]
    %v279 = vld [vmem:[%s6 + $0xc] sm:$0xf]
    %v280 = vld [vmem:[%s7] sm:$0x1]
    %v282 = vlaneseq
    %v283 = vshrl.u32 %v282, 7
    %v284 = vsub.s32 0, %v283
    %v285 = vrot.slane %v280, %v284
    %v291 = vunpack.c.l.b16 %v276
    %v292 = vunpack.c.l.b16 %v277
    %v293 = vunpack.c.l.b16 %v278
    %v294 = vunpack.c.l.b16 %v279
    %v295 = vpack.c.b16 %v292, %v291
    %v296 = vpack.c.b16 %v294, %v293
    %v300 = vsel %vm58, %v275, 0
    %302 = vmatprep.subr.bf16.mxu0 0
    %303 = vmatpush1.bf16.msra.mxu0 %v295
    %304 = vmatprep.subr.bf16.mxu0 0
    %305 = vmatpush1.bf16.msra.mxu0 %v296
    %306 = vmatprep.subr.bf16.mxu0 0
    %307 = vmatpush1.bf16.msra.mxu0 0
    %308 = vmatprep.subr.bf16.mxu0 0
    %309 = vmatpush1.bf16.msra.mxu0 0
    %310 = vmatprep.subr.bf16.mxu0 0
    %311 = vmatpush1.bf16.msra.mxu0 0
    %312 = vmatprep.subr.bf16.mxu0 0
    %313 = vmatpush1.bf16.msra.mxu0 0
    %314 = vmatprep.subr.bf16.mxu0 0
    %315 = vmatpush1.bf16.msra.mxu0 0
    %316 = vmatprep.subr.bf16.mxu0 0
    %317 = vmatpush1.bf16.msra.mxu0 0
    %318 = vmatprep.subr.bf16.mxu0 0
    %319 = vmatpush1.bf16.msra.mxu0 0
    %320 = vmatprep.subr.bf16.mxu0 0
    %321 = vmatpush1.bf16.msra.mxu0 0
    %322 = vmatprep.subr.bf16.mxu0 0
    %323 = vmatpush1.bf16.msra.mxu0 0
    %324 = vmatprep.subr.bf16.mxu0 0
    %325 = vmatpush1.bf16.msra.mxu0 0
    %326 = vmatprep.subr.bf16.mxu0 0
    %327 = vmatpush1.bf16.msra.mxu0 0
    %328 = vmatprep.subr.bf16.mxu0 0
    %329 = vmatpush1.bf16.msra.mxu0 0
    %330 = vmatprep.subr.bf16.mxu0 0
    %331 = vmatpush1.bf16.msra.mxu0 0
    %332 = vmatprep.subr.bf16.mxu0 0
    %333 = vmatpush1.bf16.msra.mxu0 0
    %334 = vmatprep.mubr.bf16.mxu0 0
    %335 = vmatmul.mubr.bf16.gmra.mrb[0].mxu0 %v300
    %v336 = vpop.f32.mrb[0].mxu0
    %v337 = vadd.f32 %v285, %v336
    %v338 = vpop.f32.mrb[0].mxu0
    %v339 = vpop.f32.mrb[0].mxu0
    %v340 = vadd.f32 %v285, %v339
    %v341 = vpop.f32.mrb[0].mxu0
    %342 = vdwg.mxu0
    %v343 = vld [vmem:[%s8] sm:$0xf]
    %v344 = vld [vmem:[%s8 + $0x4] sm:$0xf]
    %v345 = vld [vmem:[%s8 + $0x8] sm:$0xf]
    %v346 = vld [vmem:[%s8 + $0xc] sm:$0xf]
    %v347 = vld [vmem:[%s9] sm:$0x1]
    %v349 = vlaneseq
    %v350 = vshrl.u32 %v349, 7
    %v351 = vsub.s32 0, %v350
    %v352 = vrot.slane %v347, %v351
    %v358 = vunpack.c.l.b16 %v343
    %v359 = vunpack.c.l.b16 %v344
    %v360 = vunpack.c.l.b16 %v345
    %v361 = vunpack.c.l.b16 %v346
    %v362 = vpack.c.b16 %v359, %v358
    %v363 = vpack.c.b16 %v361, %v360
    %366 = vmatprep.subr.bf16.mxu0 0
    %367 = vmatpush1.bf16.msra.mxu0 %v362
    %368 = vmatprep.subr.bf16.mxu0 0
    %369 = vmatpush1.bf16.msra.mxu0 %v363
    %370 = vmatprep.subr.bf16.mxu0 0
    %371 = vmatpush1.bf16.msra.mxu0 0
    %372 = vmatprep.subr.bf16.mxu0 0
    %373 = vmatpush1.bf16.msra.mxu0 0
    %374 = vmatprep.subr.bf16.mxu0 0
    %375 = vmatpush1.bf16.msra.mxu0 0
    %376 = vmatprep.subr.bf16.mxu0 0
    %377 = vmatpush1.bf16.msra.mxu0 0
    %378 = vmatprep.subr.bf16.mxu0 0
    %379 = vmatpush1.bf16.msra.mxu0 0
    %380 = vmatprep.subr.bf16.mxu0 0
    %381 = vmatpush1.bf16.msra.mxu0 0
    %382 = vmatprep.subr.bf16.mxu0 0
    %383 = vmatpush1.bf16.msra.mxu0 0
    %384 = vmatprep.subr.bf16.mxu0 0
    %385 = vmatpush1.bf16.msra.mxu0 0
    %386 = vmatprep.subr.bf16.mxu0 0
    %387 = vmatpush1.bf16.msra.mxu0 0
    %388 = vmatprep.subr.bf16.mxu0 0
    %389 = vmatpush1.bf16.msra.mxu0 0
    %390 = vmatprep.subr.bf16.mxu0 0
    %391 = vmatpush1.bf16.msra.mxu0 0
    %392 = vmatprep.subr.bf16.mxu0 0
    %393 = vmatpush1.bf16.msra.mxu0 0
    %394 = vmatprep.subr.bf16.mxu0 0
    %395 = vmatpush1.bf16.msra.mxu0 0
    %396 = vmatprep.subr.bf16.mxu0 0
    %397 = vmatpush1.bf16.msra.mxu0 0
    %398 = vmatprep.mubr.bf16.mxu0 0
    %399 = vmatmul.mubr.bf16.gmra.mrb[0].mxu0 %v300
    %v400 = vpop.f32.mrb[0].mxu0
    %v401 = vadd.f32 %v352, %v400
    %v402 = vpop.f32.mrb[0].mxu0
    %v403 = vpop.f32.mrb[0].mxu0
    %v404 = vadd.f32 %v352, %v403
    %v405 = vpop.f32.mrb[0].mxu0
    %406 = vdwg.mxu0
    %407 = vst.msk [vmem:[#allocation2] sm:$0xff] %vm58, %v337
    %408 = vst.msk [vmem:[#allocation2 + $0x8] sm:$0xff] %vm58, %v340
    %v409 = vmax.f32 %v401, 0.0
    %v410 = vmax.f32 %v404, 0.0
    %v411 = vand.u32 2147483647, %v401
    %v412 = vand.u32 2147483647, %v404
    %v413 = vsub.f32 0.0, %v411
    %v414 = vsub.f32 0.0, %v412
    %v415 = vmul.f32 %v413, 1.442695
    %v416 = vpow.pop %v415
    %v417 = vmul.f32 %v414, 1.442695
    %v418 = vpow.pop %v417
    %v419 = vadd.f32 %v416, 1.0
    %v420 = vlog2.pop %v419
    %v421 = vmul.f32 %v420, 0.6931472
    %v422 = vmul.f32 -0.5, %v416
    %v423 = vadd.f32 %v422, 1.0
    %v424 = vmul.f32 %v423, %v416
    %v425 = vand.u32 2147483647, %v416
    %vm426 = vcmp.lt.f32.partialorder %v425, 0.0004427343
    %v427 = vsel %vm426, %v424, %v421
    %v428 = vadd.f32 %v418, 1.0
    %v429 = vlog2.pop %v428
    %v430 = vmul.f32 %v429, 0.6931472
    %v431 = vmul.f32 -0.5, %v418
    %v432 = vadd.f32 %v431, 1.0
    %v433 = vmul.f32 %v432, %v418
    %v434 = vand.u32 2147483647, %v418
    %vm435 = vcmp.lt.f32.partialorder %v434, 0.0004427343
    %v436 = vsel %vm435, %v433, %v430
    %v437 = vadd.f32 %v409, %v427
    %v438 = vadd.f32 %v410, %v436
    %v439 = vadd.f32 %v337, %v437
    %v440 = vadd.f32 %v340, %v438
    %443 = vrot.lane.b32.xlu0 %v439, 32
    %v444 = vpop.permute.xlu0 %443
    %445 = vrot.lane.b32.xlu0 %v440, 32
    %v446 = vpop.permute.xlu0 %445
    %vm449 = vcmask 523520
    %450 = vst.msk [vmem:[#allocation2] sm:$0xff] %vm449, %v444
    %451 = vst.msk [vmem:[#allocation2 + $0x8] sm:$0xff] %vm449, %v446
    // Predicated region
    $region42: #{model_forward.3} parent=1 // pred_check
      _
    $region43: #{model_forward.3} parent=1 // pred_check_branch
      %453 = sbr.rel (0) target = $region45
    $region44: #{model_forward.3} parent=1 // pred_region
      %s455 = ssub.s32 256, 256
      %456 = vsyncadd [#allocation3], %s455
      %s457 = sshll.u32 [#allocation2], 4
      %s458 = int_to_ptr.vmem [resolvable:$true] %s457
      %463 = dma.vmem_to_hbm [thread:$0]  %s458, 256, %s10, [#allocation3], 128, 128, 8
    $region45: #{model_forward.3} parent=1 // pred_fallthru
      _
    // Predicated region
    $region46: #{model_forward.3} parent=1 // pred_check
      _
    $region47: #{model_forward.3} parent=1 // pred_check_branch
      %465 = sbr.rel (0) target = $region49
    $region48: #{model_forward.3} parent=1 // pred_region
      %466 = dma.done [#allocation3], 256
    $region49: #{model_forward.3} parent=1 // pred_fallthru
      _
    %467 = vsyncpa [#allocation3], 1

</llo_original>
